<compile_context>
chip_gen: v7x
topology: tpu7x:2x2x1
jax: 0.10.0
libtpu: 0.0.40
codegen_flags: <defaults>
</compile_context>

<pallas_src>
import numpy as np
import jax
import jax.numpy as jnp
from jax.experimental import pallas as pl
from jax.experimental.pallas import tpu as pltpu


def _make_correction_kernel(use_bf16_matmul: bool):
    mm_dt = jnp.bfloat16 if use_bf16_matmul else jnp.float32

    def kernel(x_ref, w1_ref, b1_ref, w2_ref, b2_ref, w3_ref, b3_ref,
               w2t_ref, w3t_ref, w4t_ref, w1j_ref, o_ref):
        x = x_ref[...]                                                # (4, T)
        w1 = w1_ref[...]                                              # (h, 4)

        # ---- layer 1 (K=4) on the VPU: 4 broadcast multiply-adds, no MXU ----
        z1 = w1[:, 0:1] * x[0:1, :] + b1_ref[...]                     # (h,1)*(1,T)
        z1 = z1 + w1[:, 1:2] * x[1:2, :]
        z1 = z1 + w1[:, 2:3] * x[2:3, :]
        z1 = z1 + w1[:, 3:4] * x[3:4, :]
        a1 = jnp.tanh(z1)                                             # (h, T)

        # ---- layers 2/3 (h x h) on the MXU ----
        a2 = jnp.tanh(jnp.dot(w2_ref[...].astype(mm_dt), a1.astype(mm_dt),
                              preferred_element_type=jnp.float32) + b2_ref[...])
        a3 = jnp.tanh(jnp.dot(w3_ref[...].astype(mm_dt), a2.astype(mm_dt),
                              preferred_element_type=jnp.float32) + b3_ref[...])

        # ---- analytic reverse-mode gradient of sum(H_c) ----
        # dH/da3 = W4 (column w4t); d(tanh z) = 1 - tanh(z)^2
        d3 = (1.0 - a3 * a3) * w4t_ref[...]                           # (h,T)*(h,1)
        d2 = (1.0 - a2 * a2) * jnp.dot(w2t := w3t_ref[...].astype(mm_dt),
                                       d3.astype(mm_dt),
                                       preferred_element_type=jnp.float32)
        del w2t
        d1 = (1.0 - a1 * a1) * jnp.dot(w2t_ref[...].astype(mm_dt),
                                       d2.astype(mm_dt),
                                       preferred_element_type=jnp.float32)

        # ---- output layer (M=4) on VPU/XLU: 4 broadcast-mul + sublane reduces ----
        # out[j, :] = sum_i (W1 @ J)[i, j] * d1[i, :]   (J folded at prep time)
        w1j = w1j_ref[...]                                            # (h, 4)
        rows = [jnp.sum(w1j[:, j:j + 1] * d1, axis=0, keepdims=True)  # (1, T)
                for j in range(4)]
        o_ref[...] = jnp.concatenate(rows, axis=0)                    # (4, T)

    return kernel


def init_params(h_dim=32, seed=0):
    """Deterministic xavier_uniform (gain=5/3 for tanh) weights, zero biases."""
    key = jax.random.PRNGKey(seed)
    gain = 5.0 / 3.0  # torch calculate_gain('tanh')
    shapes = [(h_dim, 4), (h_dim, h_dim), (h_dim, h_dim), (1, h_dim)]
    ws, bs = [], []
    for shp in shapes:
        key, sub = jax.random.split(key)
        fan_out, fan_in = shp
        bound = gain * np.sqrt(6.0 / (fan_in + fan_out))
        ws.append(jax.random.uniform(sub, shp, jnp.float32, -bound, bound))
        bs.append(jnp.zeros((1, fan_out), jnp.float32))
    return ws, bs


def prepare_params(ws, bs):
    """One-time parameter prep (transposes / W1 @ J hoisted out of the hot path)."""
    W1, W2, W3, W4 = ws
    b1, b2, b3, _ = bs
    # Symplectic reshuffle matrix J so that out = (W1 @ J).T @ delta1 == [g1,-g0,g3,-g2].
    J = jnp.asarray(np.array([[0.0, -1.0, 0.0, 0.0],
                              [1.0,  0.0, 0.0, 0.0],
                              [0.0,  0.0, 0.0, -1.0],
                              [0.0,  0.0, 1.0, 0.0]], dtype=np.float32))
    return (W1,                       # (h, 4)   first layer (VPU broadcast MACs)
            b1.reshape(-1, 1),        # (h, 1)
            W2,                       # (h, h)
            b2.reshape(-1, 1),        # (h, 1)
            W3,                       # (h, h)
            b3.reshape(-1, 1),        # (h, 1)
            W2.T,                     # (h, h)   pre-transposed for backward
            W3.T,                     # (h, h)   pre-transposed for backward
            W4.T.reshape(-1, 1),      # (h, 1)   dH/da3 column
            W1 @ J)                   # (h, 4)   output weights with J folded in


def _round_up(x, m):
    return ((x + m - 1) // m) * m


def correction_ode_func(t, state, params, *, b_tile=8192, use_bf16_matmul=False):
    """Pallas implementation of CorrectionODEFunc.forward(t, state). state: (B, 4) f32."""
    del t  # t is unused by the PyTorch module as well
    (W1, b1c, W2, b2c, W3, b3c, W2T, W3T, W4T, W1J) = params
    h_dim = W1.shape[0]
    B = state.shape[0]
    assert b_tile % 128 == 0, "b_tile must be a multiple of 128"

    # Feature-major input: batch on the lane axis (keeps output slab lane-dense).
    x_t = state.T.astype(jnp.float32)                     # (4, B)

    # ---- batch-tile selection -------------------------------------------------
    # VMEM cap: keep ~8 live (h, tile) f32 intermediates under ~40 MiB so the
    # kernel is safe on v7x (64 MiB physical VMEM); v5e/v6e have 128 MiB.
    tile_cap = max(256, (((40 << 20) // (4 * 8 * h_dim)) // 128) * 128)
    max_tile = min(b_tile, tile_cap)

    if B < 128:
        # Single full-array block (always legal); masked stores are negligible here.
        tile = B
    elif B < 256:
        tile = 128                                        # 1-2 lane-aligned tiles
    else:
        # >=2 grid steps so ("parallel",) shards across both v7x TensorCores; the
        # last block may be ragged (no explicit padding needed).
        tile = min(max_tile, _round_up(pl.cdiv(B, 2), 128))
    grid = (pl.cdiv(B, tile),)

    def batch_map(i):
        return (0, i)

    def resident(shape):
        # Weights/biases: block index never changes -> DMA'd once, stay in VMEM.
        return pl.BlockSpec(shape, lambda i: (0, 0))

    weight_bytes = 4 * (4 * h_dim * h_dim + 12 * h_dim)
    flops = B * (8 * h_dim * h_dim + 24 * h_dim)
    transcendentals = 3 * h_dim * B
    bytes_accessed = 4 * (4 * B) * 2 + weight_bytes

    vmem_need = 4 * (8 * h_dim * tile + 2 * 2 * 4 * tile) + weight_bytes
    vmem_limit = int(min(max(32 << 20, vmem_need + (4 << 20)), 48 << 20))

    out_t = pl.pallas_call(
        _make_correction_kernel(use_bf16_matmul),
        out_shape=jax.ShapeDtypeStruct((4, B), jnp.float32),
        grid=grid,
        in_specs=[
            pl.BlockSpec((4, tile), batch_map),           # state (feature-major tile)
            resident((h_dim, 4)),                         # W1
            resident((h_dim, 1)),                         # b1
            resident((h_dim, h_dim)),                     # W2
            resident((h_dim, 1)),                         # b2
            resident((h_dim, h_dim)),                     # W3
            resident((h_dim, 1)),                         # b3
            resident((h_dim, h_dim)),                     # W2.T
            resident((h_dim, h_dim)),                     # W3.T
            resident((h_dim, 1)),                         # W4.T
            resident((h_dim, 4)),                         # W1 @ J
        ],
        out_specs=pl.BlockSpec((4, tile), batch_map),
        compiler_params=pltpu.CompilerParams(
            dimension_semantics=("parallel",),
            vmem_limit_bytes=vmem_limit),
        cost_estimate=pl.CostEstimate(flops=flops,
                                      transcendentals=transcendentals,
                                      bytes_accessed=bytes_accessed),
    )(x_t, W1, b1c, W2, b2c, W3, b3c, W2T, W3T, W4T, W1J)

    return out_t.T                                        # back to (B, 4)


def _reference(state, ws, bs):
    """Pure-JAX reference using autodiff (mirrors the PyTorch autograd path)."""
    W1, W2, W3, W4 = ws
    b1, b2, b3, _ = bs

    def H_sum(x):
        a1 = jnp.tanh(x @ W1.T + b1)
        a2 = jnp.tanh(a1 @ W2.T + b2)
        a3 = jnp.tanh(a2 @ W3.T + b3)
        return jnp.sum(a3 @ W4.T)

    g = jax.grad(H_sum)(state)
    return jnp.stack([g[:, 1], -g[:, 0], g[:, 3], -g[:, 2]], axis=1)


if __name__ == "__main__":
    H_DIM = 32
    ws, bs = init_params(h_dim=H_DIM, seed=0)
    params = prepare_params(ws, bs)
    t = jnp.float32(0.0)

    key = jax.random.PRNGKey(0)
    k1, k2 = jax.random.split(key)

    # Small batch (single-tile path, matches typical ODE-solver call).
    state_small = jax.random.normal(k1, (8, 4), dtype=jnp.float32)
    out_small = jax.block_until_ready(correction_ode_func(t, state_small, params))
    ref_small = jax.block_until_ready(_reference(state_small, ws, bs))
    np.testing.assert_allclose(np.asarray(out_small), np.asarray(ref_small),
                               rtol=1e-4, atol=1e-5)

    # Larger batch exercising >=2 grid steps + a ragged (unpadded) last block.
    state_big = jax.random.normal(k2, (300, 4), dtype=jnp.float32)
    out_big = jax.block_until_ready(correction_ode_func(t, state_big, params))
    ref_big = jax.block_until_ready(_reference(state_big, ws, bs))
    np.testing.assert_allclose(np.asarray(out_big), np.asarray(ref_big),
                               rtol=1e-4, atol=1e-5)

    # Opt-in bf16 matmul path (looser tolerance by design).
    out_bf16 = jax.block_until_ready(
        correction_ode_func(t, state_big, params, use_bf16_matmul=True))
    np.testing.assert_allclose(np.asarray(out_bf16), np.asarray(ref_big),
                               rtol=1e-1, atol=5e-2)

    print("KERNEL_OK")
</pallas_src>

<mosaic_0001>
module attributes {stable_mosaic.version = 11 : i64} {
  func.func @kernel(%arg0: i32, %arg1: memref<4x8xf32, #tpu.memory_space<vmem>>, %arg2: memref<32x4xf32, #tpu.memory_space<vmem>>, %arg3: memref<32x1xf32, #tpu.memory_space<vmem>>, %arg4: memref<32x32xf32, #tpu.memory_space<vmem>>, %arg5: memref<32x1xf32, #tpu.memory_space<vmem>>, %arg6: memref<32x32xf32, #tpu.memory_space<vmem>>, %arg7: memref<32x1xf32, #tpu.memory_space<vmem>>, %arg8: memref<32x32xf32, #tpu.memory_space<vmem>>, %arg9: memref<32x32xf32, #tpu.memory_space<vmem>>, %arg10: memref<32x1xf32, #tpu.memory_space<vmem>>, %arg11: memref<32x4xf32, #tpu.memory_space<vmem>>, %arg12: memref<4x8xf32, #tpu.memory_space<vmem>>) attributes {dimension_semantics = [#tpu.dimension_semantics<parallel>], iteration_bounds = array<i64: 1>, scalar_prefetch = 0 : i64, scratch_operands = 0 : i64, tpu.core_type = #tpu.core_type<tc>, window_params = [{transform_indices = @transform_0, window_bounds = array<i64: 4, 8>}, {pipeline_mode = #tpu.pipeline_mode<synchronous>, transform_indices = @transform_1, window_bounds = array<i64: 32, 4>}, {pipeline_mode = #tpu.pipeline_mode<synchronous>, transform_indices = @transform_2, window_bounds = array<i64: 32, 1>}, {pipeline_mode = #tpu.pipeline_mode<synchronous>, transform_indices = @transform_3, window_bounds = array<i64: 32, 32>}, {pipeline_mode = #tpu.pipeline_mode<synchronous>, transform_indices = @transform_4, window_bounds = array<i64: 32, 1>}, {pipeline_mode = #tpu.pipeline_mode<synchronous>, transform_indices = @transform_5, window_bounds = array<i64: 32, 32>}, {pipeline_mode = #tpu.pipeline_mode<synchronous>, transform_indices = @transform_6, window_bounds = array<i64: 32, 1>}, {pipeline_mode = #tpu.pipeline_mode<synchronous>, transform_indices = @transform_7, window_bounds = array<i64: 32, 32>}, {pipeline_mode = #tpu.pipeline_mode<synchronous>, transform_indices = @transform_8, window_bounds = array<i64: 32, 32>}, {pipeline_mode = #tpu.pipeline_mode<synchronous>, transform_indices = @transform_9, window_bounds = array<i64: 32, 1>}, {pipeline_mode = #tpu.pipeline_mode<synchronous>, transform_indices = @transform_10, window_bounds = array<i64: 32, 4>}, {transform_indices = @transform_11, window_bounds = array<i64: 4, 8>}]} {
    %c0 = arith.constant 0 : index
    %c0_0 = arith.constant 0 : index
    %0 = vector.load %arg1[%c0, %c0_0] : memref<4x8xf32, #tpu.memory_space<vmem>>, vector<4x8xf32>
    %c0_1 = arith.constant 0 : index
    %c0_2 = arith.constant 0 : index
    %1 = vector.load %arg2[%c0_1, %c0_2] : memref<32x4xf32, #tpu.memory_space<vmem>>, vector<32x4xf32>
    %2 = vector.extract_strided_slice %1 {offsets = [0, 0], sizes = [32, 1], strides = [1, 1]} : vector<32x4xf32> to vector<32x1xf32>
    %3 = vector.extract_strided_slice %0 {offsets = [0, 0], sizes = [1, 8], strides = [1, 1]} : vector<4x8xf32> to vector<1x8xf32>
    %4 = vector.broadcast %2 : vector<32x1xf32> to vector<32x8xf32>
    %5 = vector.broadcast %3 : vector<1x8xf32> to vector<32x8xf32>
    %6 = arith.mulf %4, %5 : vector<32x8xf32>
    %c0_3 = arith.constant 0 : index
    %c0_4 = arith.constant 0 : index
    %7 = vector.load %arg3[%c0_3, %c0_4] : memref<32x1xf32, #tpu.memory_space<vmem>>, vector<32x1xf32>
    %8 = vector.broadcast %7 : vector<32x1xf32> to vector<32x8xf32>
    %9 = arith.addf %6, %8 : vector<32x8xf32>
    %10 = vector.extract_strided_slice %1 {offsets = [0, 1], sizes = [32, 1], strides = [1, 1]} : vector<32x4xf32> to vector<32x1xf32>
    %11 = vector.extract_strided_slice %0 {offsets = [1, 0], sizes = [1, 8], strides = [1, 1]} : vector<4x8xf32> to vector<1x8xf32>
    %12 = vector.broadcast %10 : vector<32x1xf32> to vector<32x8xf32>
    %13 = vector.broadcast %11 : vector<1x8xf32> to vector<32x8xf32>
    %14 = arith.mulf %12, %13 : vector<32x8xf32>
    %15 = arith.addf %9, %14 : vector<32x8xf32>
    %16 = vector.extract_strided_slice %1 {offsets = [0, 2], sizes = [32, 1], strides = [1, 1]} : vector<32x4xf32> to vector<32x1xf32>
    %17 = vector.extract_strided_slice %0 {offsets = [2, 0], sizes = [1, 8], strides = [1, 1]} : vector<4x8xf32> to vector<1x8xf32>
    %18 = vector.broadcast %16 : vector<32x1xf32> to vector<32x8xf32>
    %19 = vector.broadcast %17 : vector<1x8xf32> to vector<32x8xf32>
    %20 = arith.mulf %18, %19 : vector<32x8xf32>
    %21 = arith.addf %15, %20 : vector<32x8xf32>
    %22 = vector.extract_strided_slice %1 {offsets = [0, 3], sizes = [32, 1], strides = [1, 1]} : vector<32x4xf32> to vector<32x1xf32>
    %23 = vector.extract_strided_slice %0 {offsets = [3, 0], sizes = [1, 8], strides = [1, 1]} : vector<4x8xf32> to vector<1x8xf32>
    %24 = vector.broadcast %22 : vector<32x1xf32> to vector<32x8xf32>
    %25 = vector.broadcast %23 : vector<1x8xf32> to vector<32x8xf32>
    %26 = arith.mulf %24, %25 : vector<32x8xf32>
    %27 = arith.addf %21, %26 : vector<32x8xf32>
    %28 = math.tanh %27 : vector<32x8xf32>
    %c0_5 = arith.constant 0 : index
    %c0_6 = arith.constant 0 : index
    %29 = vector.load %arg4[%c0_5, %c0_6] : memref<32x32xf32, #tpu.memory_space<vmem>>, vector<32x32xf32>
    %cst = arith.constant dense<0.000000e+00> : vector<32x8xf32>
    %30 = tpu.matmul %29, %28, %cst {dimension_numbers = #tpu.dot_dimension_numbers<[1], [0], [0], [1], [0, 0, 1, 1], [], []>} : vector<32x32xf32>, vector<32x8xf32>, vector<32x8xf32> -> vector<32x8xf32>
    %c0_7 = arith.constant 0 : index
    %c0_8 = arith.constant 0 : index
    %31 = vector.load %arg5[%c0_7, %c0_8] : memref<32x1xf32, #tpu.memory_space<vmem>>, vector<32x1xf32>
    %32 = vector.broadcast %31 : vector<32x1xf32> to vector<32x8xf32>
    %33 = arith.addf %30, %32 : vector<32x8xf32>
    %34 = math.tanh %33 : vector<32x8xf32>
    %c0_9 = arith.constant 0 : index
    %c0_10 = arith.constant 0 : index
    %35 = vector.load %arg6[%c0_9, %c0_10] : memref<32x32xf32, #tpu.memory_space<vmem>>, vector<32x32xf32>
    %cst_11 = arith.constant dense<0.000000e+00> : vector<32x8xf32>
    %36 = tpu.matmul %35, %34, %cst_11 {dimension_numbers = #tpu.dot_dimension_numbers<[1], [0], [0], [1], [0, 0, 1, 1], [], []>} : vector<32x32xf32>, vector<32x8xf32>, vector<32x8xf32> -> vector<32x8xf32>
    %c0_12 = arith.constant 0 : index
    %c0_13 = arith.constant 0 : index
    %37 = vector.load %arg7[%c0_12, %c0_13] : memref<32x1xf32, #tpu.memory_space<vmem>>, vector<32x1xf32>
    %38 = vector.broadcast %37 : vector<32x1xf32> to vector<32x8xf32>
    %39 = arith.addf %36, %38 : vector<32x8xf32>
    %40 = math.tanh %39 : vector<32x8xf32>
    %41 = arith.mulf %40, %40 : vector<32x8xf32>
    %cst_14 = arith.constant 1.000000e+00 : f32
    %42 = vector.broadcast %cst_14 : f32 to vector<32x8xf32>
    %43 = arith.subf %42, %41 : vector<32x8xf32>
    %c0_15 = arith.constant 0 : index
    %c0_16 = arith.constant 0 : index
    %44 = vector.load %arg10[%c0_15, %c0_16] : memref<32x1xf32, #tpu.memory_space<vmem>>, vector<32x1xf32>
    %45 = vector.broadcast %44 : vector<32x1xf32> to vector<32x8xf32>
    %46 = arith.mulf %43, %45 : vector<32x8xf32>
    %47 = arith.mulf %34, %34 : vector<32x8xf32>
    %cst_17 = arith.constant 1.000000e+00 : f32
    %48 = vector.broadcast %cst_17 : f32 to vector<32x8xf32>
    %49 = arith.subf %48, %47 : vector<32x8xf32>
    %c0_18 = arith.constant 0 : index
    %c0_19 = arith.constant 0 : index
    %50 = vector.load %arg9[%c0_18, %c0_19] : memref<32x32xf32, #tpu.memory_space<vmem>>, vector<32x32xf32>
    %cst_20 = arith.constant dense<0.000000e+00> : vector<32x8xf32>
    %51 = tpu.matmul %50, %46, %cst_20 {dimension_numbers = #tpu.dot_dimension_numbers<[1], [0], [0], [1], [0, 0, 1, 1], [], []>} : vector<32x32xf32>, vector<32x8xf32>, vector<32x8xf32> -> vector<32x8xf32>
    %52 = arith.mulf %49, %51 : vector<32x8xf32>
    %53 = arith.mulf %28, %28 : vector<32x8xf32>
    %cst_21 = arith.constant 1.000000e+00 : f32
    %54 = vector.broadcast %cst_21 : f32 to vector<32x8xf32>
    %55 = arith.subf %54, %53 : vector<32x8xf32>
    %c0_22 = arith.constant 0 : index
    %c0_23 = arith.constant 0 : index
    %56 = vector.load %arg8[%c0_22, %c0_23] : memref<32x32xf32, #tpu.memory_space<vmem>>, vector<32x32xf32>
    %cst_24 = arith.constant dense<0.000000e+00> : vector<32x8xf32>
    %57 = tpu.matmul %56, %52, %cst_24 {dimension_numbers = #tpu.dot_dimension_numbers<[1], [0], [0], [1], [0, 0, 1, 1], [], []>} : vector<32x32xf32>, vector<32x8xf32>, vector<32x8xf32> -> vector<32x8xf32>
    %58 = arith.mulf %55, %57 : vector<32x8xf32>
    %c0_25 = arith.constant 0 : index
    %c0_26 = arith.constant 0 : index
    %59 = vector.load %arg11[%c0_25, %c0_26] : memref<32x4xf32, #tpu.memory_space<vmem>>, vector<32x4xf32>
    %60 = vector.extract_strided_slice %59 {offsets = [0, 0], sizes = [32, 1], strides = [1, 1]} : vector<32x4xf32> to vector<32x1xf32>
    %61 = vector.broadcast %60 : vector<32x1xf32> to vector<32x8xf32>
    %62 = arith.mulf %61, %58 : vector<32x8xf32>
    %cst_27 = arith.constant dense<0.000000e+00> : vector<8xf32>
    %63 = vector.multi_reduction <add>, %62, %cst_27 [0] : vector<32x8xf32> to vector<8xf32>
    %64 = vector.shape_cast %63 : vector<8xf32> to vector<1x8xf32>
    %65 = vector.extract_strided_slice %59 {offsets = [0, 1], sizes = [32, 1], strides = [1, 1]} : vector<32x4xf32> to vector<32x1xf32>
    %66 = vector.broadcast %65 : vector<32x1xf32> to vector<32x8xf32>
    %67 = arith.mulf %66, %58 : vector<32x8xf32>
    %cst_28 = arith.constant dense<0.000000e+00> : vector<8xf32>
    %68 = vector.multi_reduction <add>, %67, %cst_28 [0] : vector<32x8xf32> to vector<8xf32>
    %69 = vector.shape_cast %68 : vector<8xf32> to vector<1x8xf32>
    %70 = vector.extract_strided_slice %59 {offsets = [0, 2], sizes = [32, 1], strides = [1, 1]} : vector<32x4xf32> to vector<32x1xf32>
    %71 = vector.broadcast %70 : vector<32x1xf32> to vector<32x8xf32>
    %72 = arith.mulf %71, %58 : vector<32x8xf32>
    %cst_29 = arith.constant dense<0.000000e+00> : vector<8xf32>
    %73 = vector.multi_reduction <add>, %72, %cst_29 [0] : vector<32x8xf32> to vector<8xf32>
    %74 = vector.shape_cast %73 : vector<8xf32> to vector<1x8xf32>
    %75 = vector.extract_strided_slice %59 {offsets = [0, 3], sizes = [32, 1], strides = [1, 1]} : vector<32x4xf32> to vector<32x1xf32>
    %76 = vector.broadcast %75 : vector<32x1xf32> to vector<32x8xf32>
    %77 = arith.mulf %76, %58 : vector<32x8xf32>
    %cst_30 = arith.constant dense<0.000000e+00> : vector<8xf32>
    %78 = vector.multi_reduction <add>, %77, %cst_30 [0] : vector<32x8xf32> to vector<8xf32>
    %79 = vector.shape_cast %78 : vector<8xf32> to vector<1x8xf32>
    %80 = tpu.concatenate %64, %69, %74, %79 in 0 : vector<1x8xf32>, vector<1x8xf32>, vector<1x8xf32>, vector<1x8xf32> -> vector<4x8xf32>
    %c0_31 = arith.constant 0 : index
    %c0_32 = arith.constant 0 : index
    %81 = vector.load %arg12[%c0_31, %c0_32] : memref<4x8xf32, #tpu.memory_space<vmem>>, vector<4x8xf32>
    tpu.vector_store %arg12[%c0_31, %c0_32], %80 {strides = array<i32>} : memref<4x8xf32, #tpu.memory_space<vmem>>, vector<4x8xf32>,
    return
  }
  func.func @transform_0(%arg0: i32) -> (i32, i32) {
    %c0_i32 = arith.constant 0 : i32
    %c0_i32_0 = arith.constant 0 : i32
    return %c0_i32, %arg0 : i32, i32
  }
  func.func @transform_1(%arg0: i32) -> (i32, i32) {
    %c0_i32 = arith.constant 0 : i32
    %c0_i32_0 = arith.constant 0 : i32
    %c0_i32_1 = arith.constant 0 : i32
    return %c0_i32, %c0_i32_0 : i32, i32
  }
  func.func @transform_2(%arg0: i32) -> (i32, i32) {
    %c0_i32 = arith.constant 0 : i32
    %c0_i32_0 = arith.constant 0 : i32
    %c0_i32_1 = arith.constant 0 : i32
    return %c0_i32, %c0_i32_0 : i32, i32
  }
  func.func @transform_3(%arg0: i32) -> (i32, i32) {
    %c0_i32 = arith.constant 0 : i32
    %c0_i32_0 = arith.constant 0 : i32
    %c0_i32_1 = arith.constant 0 : i32
    return %c0_i32, %c0_i32_0 : i32, i32
  }
  func.func @transform_4(%arg0: i32) -> (i32, i32) {
    %c0_i32 = arith.constant 0 : i32
    %c0_i32_0 = arith.constant 0 : i32
    %c0_i32_1 = arith.constant 0 : i32
    return %c0_i32, %c0_i32_0 : i32, i32
  }
  func.func @transform_5(%arg0: i32) -> (i32, i32) {
    %c0_i32 = arith.constant 0 : i32
    %c0_i32_0 = arith.constant 0 : i32
    %c0_i32_1 = arith.constant 0 : i32
    return %c0_i32, %c0_i32_0 : i32, i32
  }
  func.func @transform_6(%arg0: i32) -> (i32, i32) {
    %c0_i32 = arith.constant 0 : i32
    %c0_i32_0 = arith.constant 0 : i32
    %c0_i32_1 = arith.constant 0 : i32
    return %c0_i32, %c0_i32_0 : i32, i32
  }
  func.func @transform_7(%arg0: i32) -> (i32, i32) {
    %c0_i32 = arith.constant 0 : i32
    %c0_i32_0 = arith.constant 0 : i32
    %c0_i32_1 = arith.constant 0 : i32
    return %c0_i32, %c0_i32_0 : i32, i32
  }
  func.func @transform_8(%arg0: i32) -> (i32, i32) {
    %c0_i32 = arith.constant 0 : i32
    %c0_i32_0 = arith.constant 0 : i32
    %c0_i32_1 = arith.constant 0 : i32
    return %c0_i32, %c0_i32_0 : i32, i32
  }
  func.func @transform_9(%arg0: i32) -> (i32, i32) {
    %c0_i32 = arith.constant 0 : i32
    %c0_i32_0 = arith.constant 0 : i32
    %c0_i32_1 = arith.constant 0 : i32
    return %c0_i32, %c0_i32_0 : i32, i32
  }
  func.func @transform_10(%arg0: i32) -> (i32, i32) {
    %c0_i32 = arith.constant 0 : i32
    %c0_i32_0 = arith.constant 0 : i32
    %c0_i32_1 = arith.constant 0 : i32
    return %c0_i32, %c0_i32_0 : i32, i32
  }
  func.func @transform_11(%arg0: i32) -> (i32, i32) {
    %c0_i32 = arith.constant 0 : i32
    %c0_i32_0 = arith.constant 0 : i32
    return %c0_i32, %arg0 : i32, i32
  }
}

</mosaic_0001>

<llo_original>
// kernel: tpu_custom_call.1
$region0: #{tpu_custom_call.1}
  #allocation0 [shape = 'u32[]', space=smem, size = 0x4, offset = 0x4, fixed_abs, tag = 'smem constant byte address 0x4 - core index']
  #allocation1 [shape = 'u32[144,128]{1,0:T(1,128)}', space=vmem, size = 0x12000, scoped, tag = 'internal scratch']
  %s0 = inlined_call_operand.vmem [shape: f32[4,8], index: 0, kind: input, shape index: {}]
  %s1 = inlined_call_operand.vmem [shape: f32[32,4], index: 1, kind: input, shape index: {}]
  %s2 = inlined_call_operand.vmem [shape: f32[32,1], index: 2, kind: input, shape index: {}]
  %s3 = inlined_call_operand.vmem [shape: f32[32,32], index: 3, kind: input, shape index: {}]
  %s4 = inlined_call_operand.vmem [shape: f32[32,1], index: 4, kind: input, shape index: {}]
  %s5 = inlined_call_operand.vmem [shape: f32[32,32], index: 5, kind: input, shape index: {}]
  %s6 = inlined_call_operand.vmem [shape: f32[32,1], index: 6, kind: input, shape index: {}]
  %s7 = inlined_call_operand.vmem [shape: f32[32,32], index: 7, kind: input, shape index: {}]
  %s8 = inlined_call_operand.vmem [shape: f32[32,32], index: 8, kind: input, shape index: {}]
  %s9 = inlined_call_operand.vmem [shape: f32[32,1], index: 9, kind: input, shape index: {}]
  %s10 = inlined_call_operand.vmem [shape: f32[32,4], index: 10, kind: input, shape index: {}]
  %s11 = inlined_call_operand.hbm [shape: f32[4,8], index: 11, kind: output, shape index: {}]
  %s12 = sld [smem:[#allocation0]]
  $region54: #{tpu_custom_call.1} parent=0
    _
  %s14 = ssub.s32 1, %s12
  %s15 = scalar_select 0, %s14, %s12
  $region1: #{tpu_custom_call.1} parent=0
    #allocation2 [shape = 'u8[2048]{0}', space=vmem, size = 0x800, scoped, tag = 'output window, operand 0, single buffered']
    #allocation3 [shape = 's32[1]{0}', space=sflag, size = 0x4, scoped, tag = 'scoped memory for tpu_custom_call.1']
    %16 = vsyncpa [#allocation3], 0
    // Predicated region
    $region2: #{tpu_custom_call.1} parent=1 // pred_check
      _
    $region3: #{tpu_custom_call.1} parent=1 // pred_check_branch
      %18 = sbr.rel (0) target = $region5
    $region4: #{tpu_custom_call.1} parent=1 // pred_region
      _
    $region5: #{tpu_custom_call.1} parent=1 // pred_fallthru
      _
    // Predicated region
    $region6: #{tpu_custom_call.1} parent=1 // pred_check
      _
    $region7: #{tpu_custom_call.1} parent=1 // pred_check_branch
      %20 = sbr.rel (0) target = $region9
    $region8: #{tpu_custom_call.1} parent=1 // pred_region
      _
    $region9: #{tpu_custom_call.1} parent=1 // pred_fallthru
      _
    // Predicated region
    $region10: #{tpu_custom_call.1} parent=1 // pred_check
      _
    $region11: #{tpu_custom_call.1} parent=1 // pred_check_branch
      %22 = sbr.rel (0) target = $region13
    $region12: #{tpu_custom_call.1} parent=1 // pred_region
      _
    $region13: #{tpu_custom_call.1} parent=1 // pred_fallthru
      _
    // Predicated region
    $region14: #{tpu_custom_call.1} parent=1 // pred_check
      _
    $region15: #{tpu_custom_call.1} parent=1 // pred_check_branch
      %24 = sbr.rel (0) target = $region17
    $region16: #{tpu_custom_call.1} parent=1 // pred_region
      _
    $region17: #{tpu_custom_call.1} parent=1 // pred_fallthru
      _
    // Predicated region
    $region18: #{tpu_custom_call.1} parent=1 // pred_check
      _
    $region19: #{tpu_custom_call.1} parent=1 // pred_check_branch
      %26 = sbr.rel (0) target = $region21
    $region20: #{tpu_custom_call.1} parent=1 // pred_region
      _
    $region21: #{tpu_custom_call.1} parent=1 // pred_fallthru
      _
    // Predicated region
    $region22: #{tpu_custom_call.1} parent=1 // pred_check
      _
    $region23: #{tpu_custom_call.1} parent=1 // pred_check_branch
      %28 = sbr.rel (0) target = $region25
    $region24: #{tpu_custom_call.1} parent=1 // pred_region
      _
    $region25: #{tpu_custom_call.1} parent=1 // pred_fallthru
      _
    // Predicated region
    $region26: #{tpu_custom_call.1} parent=1 // pred_check
      _
    $region27: #{tpu_custom_call.1} parent=1 // pred_check_branch
      %30 = sbr.rel (0) target = $region29
    $region28: #{tpu_custom_call.1} parent=1 // pred_region
      _
    $region29: #{tpu_custom_call.1} parent=1 // pred_fallthru
      _
    // Predicated region
    $region30: #{tpu_custom_call.1} parent=1 // pred_check
      _
    $region31: #{tpu_custom_call.1} parent=1 // pred_check_branch
      %32 = sbr.rel (0) target = $region33
    $region32: #{tpu_custom_call.1} parent=1 // pred_region
      _
    $region33: #{tpu_custom_call.1} parent=1 // pred_fallthru
      _
    // Predicated region
    $region34: #{tpu_custom_call.1} parent=1 // pred_check
      _
    $region35: #{tpu_custom_call.1} parent=1 // pred_check_branch
      %34 = sbr.rel (0) target = $region37
    $region36: #{tpu_custom_call.1} parent=1 // pred_region
      _
    $region37: #{tpu_custom_call.1} parent=1 // pred_fallthru
      _
    // Predicated region
    $region38: #{tpu_custom_call.1} parent=1 // pred_check
      _
    $region39: #{tpu_custom_call.1} parent=1 // pred_check_branch
      %36 = sbr.rel (0) target = $region41
    $region40: #{tpu_custom_call.1} parent=1 // pred_region
      _
    $region41: #{tpu_custom_call.1} parent=1 // pred_fallthru
      _
    // Predicated region
    $region42: #{tpu_custom_call.1} parent=1 // pred_check
      _
    $region43: #{tpu_custom_call.1} parent=1 // pred_check_branch
      %38 = sbr.rel (0) target = $region45
    $region44: #{tpu_custom_call.1} parent=1 // pred_region
      _
    $region45: #{tpu_custom_call.1} parent=1 // pred_fallthru
      _
    %v39 = vld [vmem:[%s0] sm:$0xf]
    %v40 = vld [vmem:[%s1] sm:$0xff]
    %v41 = vld [vmem:[%s1 + $0x8] sm:$0xff]
    %v42 = vld [vmem:[%s1 + $0x10] sm:$0xff]
    %v43 = vld [vmem:[%s1 + $0x18] sm:$0xff]
    %45 = vset.pattern.permute.xlu0 0
    %46 = vperm.xlu0 %45, %v40
    %v47 = vpop.permute.xlu0 %46
    %50 = vset.pattern.permute.xlu0 0
    %51 = vperm.xlu0 %50, %v41
    %v52 = vpop.permute.xlu0 %51
    %55 = vset.pattern.permute.xlu0 0
    %56 = vperm.xlu0 %55, %v42
    %v57 = vpop.permute.xlu0 %56
    %60 = vset.pattern.permute.xlu0 0
    %61 = vperm.xlu0 %60, %v43
    %v62 = vpop.permute.xlu0 %61
    %v64 = vlaneseq
    %v65 = vshrl.u32 %v64, 7
    %v66 = vsub.s32 0, %v65
    %v67 = vrot.slane %v39, %v66
    %v68 = vmul.f32 %v47, %v67
    %v69 = vmul.f32 %v52, %v67
    %v70 = vmul.f32 %v57, %v67
    %v71 = vmul.f32 %v62, %v67
    %v72 = vld [vmem:[%s2] sm:$0xff]
    %v73 = vld [vmem:[%s2 + $0x8] sm:$0xff]
    %v74 = vld [vmem:[%s2 + $0x10] sm:$0xff]
    %v75 = vld [vmem:[%s2 + $0x18] sm:$0xff]
    %77 = vset.pattern.permute.xlu0 0
    %78 = vperm.xlu0 %77, %v72
    %v79 = vpop.permute.xlu0 %78
    %82 = vset.pattern.permute.xlu0 0
    %83 = vperm.xlu0 %82, %v73
    %v84 = vpop.permute.xlu0 %83
    %87 = vset.pattern.permute.xlu0 0
    %88 = vperm.xlu0 %87, %v74
    %v89 = vpop.permute.xlu0 %88
    %92 = vset.pattern.permute.xlu0 0
    %93 = vperm.xlu0 %92, %v75
    %v94 = vpop.permute.xlu0 %93
    %v96 = vadd.f32 %v68, %v79
    %v97 = vadd.f32 %v69, %v84
    %v98 = vadd.f32 %v70, %v89
    %v99 = vadd.f32 %v71, %v94
    %100 = vset.pattern.permute.xlu0 1
    %101 = vperm.xlu0 %100, %v40
    %v102 = vpop.permute.xlu0 %101
    %104 = vset.pattern.permute.xlu0 1
    %105 = vperm.xlu0 %104, %v41
    %v106 = vpop.permute.xlu0 %105
    %108 = vset.pattern.permute.xlu0 1
    %109 = vperm.xlu0 %108, %v42
    %v110 = vpop.permute.xlu0 %109
    %112 = vset.pattern.permute.xlu0 1
    %113 = vperm.xlu0 %112, %v43
    %v114 = vpop.permute.xlu0 %113
    %v116 = vlaneseq
    %v117 = vshrl.u32 %v116, 7
    %v118 = vsub.s32 1, %v117
    %v119 = vrot.slane %v39, %v118
    %v120 = vmul.f32 %v102, %v119
    %v121 = vmul.f32 %v106, %v119
    %v122 = vmul.f32 %v110, %v119
    %v123 = vmul.f32 %v114, %v119
    %v124 = vadd.f32 %v96, %v120
    %v125 = vadd.f32 %v97, %v121
    %v126 = vadd.f32 %v98, %v122
    %v127 = vadd.f32 %v99, %v123
    %128 = vset.pattern.permute.xlu0 2
    %129 = vperm.xlu0 %128, %v40
    %v130 = vpop.permute.xlu0 %129
    %132 = vset.pattern.permute.xlu0 2
    %133 = vperm.xlu0 %132, %v41
    %v134 = vpop.permute.xlu0 %133
    %136 = vset.pattern.permute.xlu0 2
    %137 = vperm.xlu0 %136, %v42
    %v138 = vpop.permute.xlu0 %137
    %140 = vset.pattern.permute.xlu0 2
    %141 = vperm.xlu0 %140, %v43
    %v142 = vpop.permute.xlu0 %141
    %v144 = vlaneseq
    %v145 = vshrl.u32 %v144, 7
    %v146 = vsub.s32 2, %v145
    %v147 = vrot.slane %v39, %v146
    %v148 = vmul.f32 %v130, %v147
    %v149 = vmul.f32 %v134, %v147
    %v150 = vmul.f32 %v138, %v147
    %v151 = vmul.f32 %v142, %v147
    %v152 = vadd.f32 %v124, %v148
    %v153 = vadd.f32 %v125, %v149
    %v154 = vadd.f32 %v126, %v150
    %v155 = vadd.f32 %v127, %v151
    %156 = vset.pattern.permute.xlu0 3
    %157 = vperm.xlu0 %156, %v40
    %v158 = vpop.permute.xlu0 %157
    %160 = vset.pattern.permute.xlu0 3
    %161 = vperm.xlu0 %160, %v41
    %v162 = vpop.permute.xlu0 %161
    %164 = vset.pattern.permute.xlu0 3
    %165 = vperm.xlu0 %164, %v42
    %v166 = vpop.permute.xlu0 %165
    %168 = vset.pattern.permute.xlu0 3
    %169 = vperm.xlu0 %168, %v43
    %v170 = vpop.permute.xlu0 %169
    %v172 = vlaneseq
    %v173 = vshrl.u32 %v172, 7
    %v174 = vsub.s32 3, %v173
    %v175 = vrot.slane %v39, %v174
    %v176 = vmul.f32 %v158, %v175
    %v177 = vmul.f32 %v162, %v175
    %v178 = vmul.f32 %v166, %v175
    %v179 = vmul.f32 %v170, %v175
    %v180 = vadd.f32 %v152, %v176
    %v181 = vadd.f32 %v153, %v177
    %v182 = vadd.f32 %v154, %v178
    %v183 = vadd.f32 %v155, %v179
    %v184 = vtanh.pop %v180
    %v185 = vtanh.pop %v181
    %v186 = vtanh.pop %v182
    %v187 = vtanh.pop %v183
    %v188 = vld [vmem:[%s3] sm:$0xff]
    %v189 = vld [vmem:[%s3 + $0x8] sm:$0xff]
    %v190 = vld [vmem:[%s3 + $0x10] sm:$0xff]
    %v191 = vld [vmem:[%s3 + $0x18] sm:$0xff]
    %v192 = vld [vmem:[%s4] sm:$0xff]
    %v193 = vld [vmem:[%s4 + $0x8] sm:$0xff]
    %v194 = vld [vmem:[%s4 + $0x10] sm:$0xff]
    %v195 = vld [vmem:[%s4 + $0x18] sm:$0xff]
    %197 = vset.pattern.permute.xlu0 0
    %198 = vperm.xlu0 %197, %v192
    %v199 = vpop.permute.xlu0 %198
    %202 = vset.pattern.permute.xlu0 0
    %203 = vperm.xlu0 %202, %v193
    %v204 = vpop.permute.xlu0 %203
    %207 = vset.pattern.permute.xlu0 0
    %208 = vperm.xlu0 %207, %v194
    %v209 = vpop.permute.xlu0 %208
    %212 = vset.pattern.permute.xlu0 0
    %213 = vperm.xlu0 %212, %v195
    %v214 = vpop.permute.xlu0 %213
    %vm216 = vcmask 261120
    %v218 = vsel %vm216, %v188, 0
    %v221 = vsel %vm216, %v189, 0
    %v224 = vsel %vm216, %v190, 0
    %v227 = vsel %vm216, %v191, 0
    %229 = vmatprep.subr.mxu0 0.0
    %230 = vmatpush1.msra.mxu0 %v184
    %231 = vmatprep.subr.mxu0 0.0
    %232 = vmatpush1.msra.mxu0 %v185
    %233 = vmatprep.subr.mxu0 0.0
    %234 = vmatpush1.msra.mxu0 %v186
    %235 = vmatprep.subr.mxu0 0.0
    %236 = vmatpush1.msra.mxu0 %v187
    %237 = vmatprep.subr.mxu0 0.0
    %238 = vmatpush1.msra.mxu0 0.0
    %239 = vmatprep.subr.mxu0 0.0
    %240 = vmatpush1.msra.mxu0 0.0
    %241 = vmatprep.subr.mxu0 0.0
    %242 = vmatpush1.msra.mxu0 0.0
    %243 = vmatprep.subr.mxu0 0.0
    %244 = vmatpush1.msra.mxu0 0.0
    %245 = vmatprep.subr.mxu0 0.0
    %246 = vmatpush1.msra.mxu0 0.0
    %247 = vmatprep.subr.mxu0 0.0
    %248 = vmatpush1.msra.mxu0 0.0
    %249 = vmatprep.subr.mxu0 0.0
    %250 = vmatpush1.msra.mxu0 0.0
    %251 = vmatprep.subr.mxu0 0.0
    %252 = vmatpush1.msra.mxu0 0.0
    %253 = vmatprep.subr.mxu0 0.0
    %254 = vmatpush1.msra.mxu0 0.0
    %255 = vmatprep.subr.mxu0 0.0
    %256 = vmatpush1.msra.mxu0 0.0
    %257 = vmatprep.subr.mxu0 0.0
    %258 = vmatpush1.msra.mxu0 0.0
    %259 = vmatprep.subr.mxu0 0.0
    %260 = vmatpush1.msra.mxu0 0.0
    %261 = vmatprep.subr.mxu0 0.0
    %262 = vmatpush1.msra.mxu0 0.0
    %263 = vmatprep.subr.mxu0 0.0
    %264 = vmatpush1.msra.mxu0 0.0
    %265 = vmatprep.subr.mxu0 0.0
    %266 = vmatpush1.msra.mxu0 0.0
    %267 = vmatprep.subr.mxu0 0.0
    %268 = vmatpush1.msra.mxu0 0.0
    %269 = vmatprep.subr.mxu0 0.0
    %270 = vmatpush1.msra.mxu0 0.0
    %271 = vmatprep.subr.mxu0 0.0
    %272 = vmatpush1.msra.mxu0 0.0
    %273 = vmatprep.subr.mxu0 0.0
    %274 = vmatpush1.msra.mxu0 0.0
    %275 = vmatprep.subr.mxu0 0.0
    %276 = vmatpush1.msra.mxu0 0.0
    %277 = vmatprep.subr.mxu0 0.0
    %278 = vmatpush1.msra.mxu0 0.0
    %279 = vmatprep.subr.mxu0 0.0
    %280 = vmatpush1.msra.mxu0 0.0
    %281 = vmatprep.subr.mxu0 0.0
    %282 = vmatpush1.msra.mxu0 0.0
    %283 = vmatprep.subr.mxu0 0.0
    %284 = vmatpush1.msra.mxu0 0.0
    %285 = vmatprep.subr.mxu0 0.0
    %286 = vmatpush1.msra.mxu0 0.0
    %287 = vmatprep.subr.mxu0 0.0
    %288 = vmatpush1.msra.mxu0 0.0
    %289 = vmatprep.subr.mxu0 0.0
    %290 = vmatpush1.msra.mxu0 0.0
    %291 = vmatprep.subr.mxu0 0.0
    %292 = vmatpush1.msra.mxu0 0.0
    %293 = vmatprep.mubr.f32.mxu0 0.0
    %294 = vmatmul.mubr.f32.gmra.mrb[0].mxu0 %v218
    %v295 = vpop.f32.mrb[0].mxu0
    %v296 = vadd.f32 %v199, %v295
    %v297 = vpop.f32.mrb[0].mxu0
    %298 = vmatprep.mubr.f32.mxu0 0.0
    %299 = vmatmul.mubr.f32.gmra.mrb[0].mxu0 %v221
    %v300 = vpop.f32.mrb[0].mxu0
    %v301 = vadd.f32 %v204, %v300
    %v302 = vpop.f32.mrb[0].mxu0
    %303 = vmatprep.mubr.f32.mxu0 0.0
    %304 = vmatmul.mubr.f32.gmra.mrb[0].mxu0 %v224
    %v305 = vpop.f32.mrb[0].mxu0
    %v306 = vadd.f32 %v209, %v305
    %v307 = vpop.f32.mrb[0].mxu0
    %308 = vmatprep.mubr.f32.mxu0 0.0
    %309 = vmatmul.mubr.f32.gmra.mrb[0].mxu0 %v227
    %v310 = vpop.f32.mrb[0].mxu0
    %v311 = vadd.f32 %v214, %v310
    %v312 = vpop.f32.mrb[0].mxu0
    %313 = vdwg.mxu0
    %v314 = vtanh.pop %v296
    %v315 = vtanh.pop %v301
    %v316 = vtanh.pop %v306
    %v317 = vtanh.pop %v311
    %v318 = vld [vmem:[%s5] sm:$0xff]
    %v319 = vld [vmem:[%s5 + $0x8] sm:$0xff]
    %v320 = vld [vmem:[%s5 + $0x10] sm:$0xff]
    %v321 = vld [vmem:[%s5 + $0x18] sm:$0xff]
    %v322 = vld [vmem:[%s6] sm:$0xff]
    %v323 = vld [vmem:[%s6 + $0x8] sm:$0xff]
    %v324 = vld [vmem:[%s6 + $0x10] sm:$0xff]
    %v325 = vld [vmem:[%s6 + $0x18] sm:$0xff]
    %327 = vset.pattern.permute.xlu0 0
    %328 = vperm.xlu0 %327, %v322
    %v329 = vpop.permute.xlu0 %328
    %332 = vset.pattern.permute.xlu0 0
    %333 = vperm.xlu0 %332, %v323
    %v334 = vpop.permute.xlu0 %333
    %337 = vset.pattern.permute.xlu0 0
    %338 = vperm.xlu0 %337, %v324
    %v339 = vpop.permute.xlu0 %338
    %342 = vset.pattern.permute.xlu0 0
    %343 = vperm.xlu0 %342, %v325
    %v344 = vpop.permute.xlu0 %343
    %v347 = vsel %vm216, %v318, 0
    %v350 = vsel %vm216, %v319, 0
    %v353 = vsel %vm216, %v320, 0
    %v356 = vsel %vm216, %v321, 0
    %358 = vmatprep.subr.mxu0 0.0
    %359 = vmatpush1.msra.mxu0 %v314
    %360 = vmatprep.subr.mxu0 0.0
    %361 = vmatpush1.msra.mxu0 %v315
    %362 = vmatprep.subr.mxu0 0.0
    %363 = vmatpush1.msra.mxu0 %v316
    %364 = vmatprep.subr.mxu0 0.0
    %365 = vmatpush1.msra.mxu0 %v317
    %366 = vmatprep.subr.mxu0 0.0
    %367 = vmatpush1.msra.mxu0 0.0
    %368 = vmatprep.subr.mxu0 0.0
    %369 = vmatpush1.msra.mxu0 0.0
    %370 = vmatprep.subr.mxu0 0.0
    %371 = vmatpush1.msra.mxu0 0.0
    %372 = vmatprep.subr.mxu0 0.0
    %373 = vmatpush1.msra.mxu0 0.0
    %374 = vmatprep.subr.mxu0 0.0
    %375 = vmatpush1.msra.mxu0 0.0
    %376 = vmatprep.subr.mxu0 0.0
    %377 = vmatpush1.msra.mxu0 0.0
    %378 = vmatprep.subr.mxu0 0.0
    %379 = vmatpush1.msra.mxu0 0.0
    %380 = vmatprep.subr.mxu0 0.0
    %381 = vmatpush1.msra.mxu0 0.0
    %382 = vmatprep.subr.mxu0 0.0
    %383 = vmatpush1.msra.mxu0 0.0
    %384 = vmatprep.subr.mxu0 0.0
    %385 = vmatpush1.msra.mxu0 0.0
    %386 = vmatprep.subr.mxu0 0.0
    %387 = vmatpush1.msra.mxu0 0.0
    %388 = vmatprep.subr.mxu0 0.0
    %389 = vmatpush1.msra.mxu0 0.0
    %390 = vmatprep.subr.mxu0 0.0
    %391 = vmatpush1.msra.mxu0 0.0
    %392 = vmatprep.subr.mxu0 0.0
    %393 = vmatpush1.msra.mxu0 0.0
    %394 = vmatprep.subr.mxu0 0.0
    %395 = vmatpush1.msra.mxu0 0.0
    %396 = vmatprep.subr.mxu0 0.0
    %397 = vmatpush1.msra.mxu0 0.0
    %398 = vmatprep.subr.mxu0 0.0
    %399 = vmatpush1.msra.mxu0 0.0
    %400 = vmatprep.subr.mxu0 0.0
    %401 = vmatpush1.msra.mxu0 0.0
    %402 = vmatprep.subr.mxu0 0.0
    %403 = vmatpush1.msra.mxu0 0.0
    %404 = vmatprep.subr.mxu0 0.0
    %405 = vmatpush1.msra.mxu0 0.0
    %406 = vmatprep.subr.mxu0 0.0
    %407 = vmatpush1.msra.mxu0 0.0
    %408 = vmatprep.subr.mxu0 0.0
    %409 = vmatpush1.msra.mxu0 0.0
    %410 = vmatprep.subr.mxu0 0.0
    %411 = vmatpush1.msra.mxu0 0.0
    %412 = vmatprep.subr.mxu0 0.0
    %413 = vmatpush1.msra.mxu0 0.0
    %414 = vmatprep.subr.mxu0 0.0
    %415 = vmatpush1.msra.mxu0 0.0
    %416 = vmatprep.subr.mxu0 0.0
    %417 = vmatpush1.msra.mxu0 0.0
    %418 = vmatprep.subr.mxu0 0.0
    %419 = vmatpush1.msra.mxu0 0.0
    %420 = vmatprep.subr.mxu0 0.0
    %421 = vmatpush1.msra.mxu0 0.0
    %422 = vmatprep.mubr.f32.mxu0 0.0
    %423 = vmatmul.mubr.f32.gmra.mrb[0].mxu0 %v347
    %v424 = vpop.f32.mrb[0].mxu0
    %v425 = vadd.f32 %v329, %v424
    %v426 = vpop.f32.mrb[0].mxu0
    %427 = vmatprep.mubr.f32.mxu0 0.0
    %428 = vmatmul.mubr.f32.gmra.mrb[0].mxu0 %v350
    %v429 = vpop.f32.mrb[0].mxu0
    %v430 = vadd.f32 %v334, %v429
    %v431 = vpop.f32.mrb[0].mxu0
    %432 = vmatprep.mubr.f32.mxu0 0.0
    %433 = vmatmul.mubr.f32.gmra.mrb[0].mxu0 %v353
    %v434 = vpop.f32.mrb[0].mxu0
    %v435 = vadd.f32 %v339, %v434
    %v436 = vpop.f32.mrb[0].mxu0
    %437 = vmatprep.mubr.f32.mxu0 0.0
    %438 = vmatmul.mubr.f32.gmra.mrb[0].mxu0 %v356
    %v439 = vpop.f32.mrb[0].mxu0
    %v440 = vadd.f32 %v344, %v439
    %v441 = vpop.f32.mrb[0].mxu0
    %442 = vdwg.mxu0
    %v443 = vtanh.pop %v425
    %v444 = vtanh.pop %v430
    %v445 = vtanh.pop %v435
    %v446 = vtanh.pop %v440
    %v447 = vmul.f32 %v443, %v443
    %v448 = vmul.f32 %v444, %v444
    %v449 = vmul.f32 %v445, %v445
    %v450 = vmul.f32 %v446, %v446
    %v451 = vsub.f32 1.0, %v447
    %v452 = vsub.f32 1.0, %v448
    %v453 = vsub.f32 1.0, %v449
    %v454 = vsub.f32 1.0, %v450
    %v455 = vld [vmem:[%s9] sm:$0xff]
    %v456 = vld [vmem:[%s9 + $0x8] sm:$0xff]
    %v457 = vld [vmem:[%s9 + $0x10] sm:$0xff]
    %v458 = vld [vmem:[%s9 + $0x18] sm:$0xff]
    %460 = vset.pattern.permute.xlu0 0
    %461 = vperm.xlu0 %460, %v455
    %v462 = vpop.permute.xlu0 %461
    %465 = vset.pattern.permute.xlu0 0
    %466 = vperm.xlu0 %465, %v456
    %v467 = vpop.permute.xlu0 %466
    %470 = vset.pattern.permute.xlu0 0
    %471 = vperm.xlu0 %470, %v457
    %v472 = vpop.permute.xlu0 %471
    %475 = vset.pattern.permute.xlu0 0
    %476 = vperm.xlu0 %475, %v458
    %v477 = vpop.permute.xlu0 %476
    %v479 = vmul.f32 %v451, %v462
    %v480 = vmul.f32 %v452, %v467
    %v481 = vmul.f32 %v453, %v472
    %v482 = vmul.f32 %v454, %v477
    %v483 = vmul.f32 %v314, %v314
    %v484 = vmul.f32 %v315, %v315
    %v485 = vmul.f32 %v316, %v316
    %v486 = vmul.f32 %v317, %v317
    %v487 = vsub.f32 1.0, %v483
    %v488 = vsub.f32 1.0, %v484
    %v489 = vsub.f32 1.0, %v485
    %v490 = vsub.f32 1.0, %v486
    %v491 = vld [vmem:[%s8] sm:$0xff]
    %v492 = vld [vmem:[%s8 + $0x8] sm:$0xff]
    %v493 = vld [vmem:[%s8 + $0x10] sm:$0xff]
    %v494 = vld [vmem:[%s8 + $0x18] sm:$0xff]
    %v496 = vsel %vm216, %v491, 0
    %v499 = vsel %vm216, %v492, 0
    %v502 = vsel %vm216, %v493, 0
    %v505 = vsel %vm216, %v494, 0
    %507 = vmatprep.subr.mxu0 0.0
    %508 = vmatpush1.msra.mxu0 %v479
    %509 = vmatprep.subr.mxu0 0.0
    %510 = vmatpush1.msra.mxu0 %v480
    %511 = vmatprep.subr.mxu0 0.0
    %512 = vmatpush1.msra.mxu0 %v481
    %513 = vmatprep.subr.mxu0 0.0
    %514 = vmatpush1.msra.mxu0 %v482
    %515 = vmatprep.subr.mxu0 0.0
    %516 = vmatpush1.msra.mxu0 0.0
    %517 = vmatprep.subr.mxu0 0.0
    %518 = vmatpush1.msra.mxu0 0.0
    %519 = vmatprep.subr.mxu0 0.0
    %520 = vmatpush1.msra.mxu0 0.0
    %521 = vmatprep.subr.mxu0 0.0
    %522 = vmatpush1.msra.mxu0 0.0
    %523 = vmatprep.subr.mxu0 0.0
    %524 = vmatpush1.msra.mxu0 0.0
    %525 = vmatprep.subr.mxu0 0.0
    %526 = vmatpush1.msra.mxu0 0.0
    %527 = vmatprep.subr.mxu0 0.0
    %528 = vmatpush1.msra.mxu0 0.0
    %529 = vmatprep.subr.mxu0 0.0
    %530 = vmatpush1.msra.mxu0 0.0
    %531 = vmatprep.subr.mxu0 0.0
    %532 = vmatpush1.msra.mxu0 0.0
    %533 = vmatprep.subr.mxu0 0.0
    %534 = vmatpush1.msra.mxu0 0.0
    %535 = vmatprep.subr.mxu0 0.0
    %536 = vmatpush1.msra.mxu0 0.0
    %537 = vmatprep.subr.mxu0 0.0
    %538 = vmatpush1.msra.mxu0 0.0
    %539 = vmatprep.subr.mxu0 0.0
    %540 = vmatpush1.msra.mxu0 0.0
    %541 = vmatprep.subr.mxu0 0.0
    %542 = vmatpush1.msra.mxu0 0.0
    %543 = vmatprep.subr.mxu0 0.0
    %544 = vmatpush1.msra.mxu0 0.0
    %545 = vmatprep.subr.mxu0 0.0
    %546 = vmatpush1.msra.mxu0 0.0
    %547 = vmatprep.subr.mxu0 0.0
    %548 = vmatpush1.msra.mxu0 0.0
    %549 = vmatprep.subr.mxu0 0.0
    %550 = vmatpush1.msra.mxu0 0.0
    %551 = vmatprep.subr.mxu0 0.0
    %552 = vmatpush1.msra.mxu0 0.0
    %553 = vmatprep.subr.mxu0 0.0
    %554 = vmatpush1.msra.mxu0 0.0
    %555 = vmatprep.subr.mxu0 0.0
    %556 = vmatpush1.msra.mxu0 0.0
    %557 = vmatprep.subr.mxu0 0.0
    %558 = vmatpush1.msra.mxu0 0.0
    %559 = vmatprep.subr.mxu0 0.0
    %560 = vmatpush1.msra.mxu0 0.0
    %561 = vmatprep.subr.mxu0 0.0
    %562 = vmatpush1.msra.mxu0 0.0
    %563 = vmatprep.subr.mxu0 0.0
    %564 = vmatpush1.msra.mxu0 0.0
    %565 = vmatprep.subr.mxu0 0.0
    %566 = vmatpush1.msra.mxu0 0.0
    %567 = vmatprep.subr.mxu0 0.0
    %568 = vmatpush1.msra.mxu0 0.0
    %569 = vmatprep.subr.mxu0 0.0
    %570 = vmatpush1.msra.mxu0 0.0
    %571 = vmatprep.mubr.f32.mxu0 0.0
    %572 = vmatmul.mubr.f32.gmra.mrb[0].mxu0 %v496
    %v573 = vpop.f32.mrb[0].mxu0
    %v574 = vadd.f32 0.0, %v573
    %v575 = vpop.f32.mrb[0].mxu0
    %576 = vmatprep.mubr.f32.mxu0 0.0
    %577 = vmatmul.mubr.f32.gmra.mrb[0].mxu0 %v499
    %v578 = vpop.f32.mrb[0].mxu0
    %v579 = vadd.f32 0.0, %v578
    %v580 = vpop.f32.mrb[0].mxu0
    %581 = vmatprep.mubr.f32.mxu0 0.0
    %582 = vmatmul.mubr.f32.gmra.mrb[0].mxu0 %v502
    %v583 = vpop.f32.mrb[0].mxu0
    %v584 = vadd.f32 0.0, %v583
    %v585 = vpop.f32.mrb[0].mxu0
    %586 = vmatprep.mubr.f32.mxu0 0.0
    %587 = vmatmul.mubr.f32.gmra.mrb[0].mxu0 %v505
    %v588 = vpop.f32.mrb[0].mxu0
    %v589 = vadd.f32 0.0, %v588
    %v590 = vpop.f32.mrb[0].mxu0
    %591 = vdwg.mxu0
    %v592 = vmul.f32 %v487, %v574
    %v593 = vmul.f32 %v488, %v579
    %v594 = vmul.f32 %v489, %v584
    %v595 = vmul.f32 %v490, %v589
    %v596 = vmul.f32 %v184, %v184
    %v597 = vmul.f32 %v185, %v185
    %v598 = vmul.f32 %v186, %v186
    %v599 = vmul.f32 %v187, %v187
    %v600 = vsub.f32 1.0, %v596
    %v601 = vsub.f32 1.0, %v597
    %v602 = vsub.f32 1.0, %v598
    %v603 = vsub.f32 1.0, %v599
    %v604 = vld [vmem:[%s7] sm:$0xff]
    %v605 = vld [vmem:[%s7 + $0x8] sm:$0xff]
    %v606 = vld [vmem:[%s7 + $0x10] sm:$0xff]
    %v607 = vld [vmem:[%s7 + $0x18] sm:$0xff]
    %v609 = vsel %vm216, %v604, 0
    %v612 = vsel %vm216, %v605, 0
    %v615 = vsel %vm216, %v606, 0
    %v618 = vsel %vm216, %v607, 0
    %620 = vmatprep.subr.mxu0 0.0
    %621 = vmatpush1.msra.mxu0 %v592
    %622 = vmatprep.subr.mxu0 0.0
    %623 = vmatpush1.msra.mxu0 %v593
    %624 = vmatprep.subr.mxu0 0.0
    %625 = vmatpush1.msra.mxu0 %v594
    %626 = vmatprep.subr.mxu0 0.0
    %627 = vmatpush1.msra.mxu0 %v595
    %628 = vmatprep.subr.mxu0 0.0
    %629 = vmatpush1.msra.mxu0 0.0
    %630 = vmatprep.subr.mxu0 0.0
    %631 = vmatpush1.msra.mxu0 0.0
    %632 = vmatprep.subr.mxu0 0.0
    %633 = vmatpush1.msra.mxu0 0.0
    %634 = vmatprep.subr.mxu0 0.0
    %635 = vmatpush1.msra.mxu0 0.0
    %636 = vmatprep.subr.mxu0 0.0
    %637 = vmatpush1.msra.mxu0 0.0
    %638 = vmatprep.subr.mxu0 0.0
    %639 = vmatpush1.msra.mxu0 0.0
    %640 = vmatprep.subr.mxu0 0.0
    %641 = vmatpush1.msra.mxu0 0.0
    %642 = vmatprep.subr.mxu0 0.0
    %643 = vmatpush1.msra.mxu0 0.0
    %644 = vmatprep.subr.mxu0 0.0
    %645 = vmatpush1.msra.mxu0 0.0
    %646 = vmatprep.subr.mxu0 0.0
    %647 = vmatpush1.msra.mxu0 0.0
    %648 = vmatprep.subr.mxu0 0.0
    %649 = vmatpush1.msra.mxu0 0.0
    %650 = vmatprep.subr.mxu0 0.0
    %651 = vmatpush1.msra.mxu0 0.0
    %652 = vmatprep.subr.mxu0 0.0
    %653 = vmatpush1.msra.mxu0 0.0
    %654 = vmatprep.subr.mxu0 0.0
    %655 = vmatpush1.msra.mxu0 0.0
    %656 = vmatprep.subr.mxu0 0.0
    %657 = vmatpush1.msra.mxu0 0.0
    %658 = vmatprep.subr.mxu0 0.0
    %659 = vmatpush1.msra.mxu0 0.0
    %660 = vmatprep.subr.mxu0 0.0
    %661 = vmatpush1.msra.mxu0 0.0
    %662 = vmatprep.subr.mxu0 0.0
    %663 = vmatpush1.msra.mxu0 0.0
    %664 = vmatprep.subr.mxu0 0.0
    %665 = vmatpush1.msra.mxu0 0.0
    %666 = vmatprep.subr.mxu0 0.0
    %667 = vmatpush1.msra.mxu0 0.0
    %668 = vmatprep.subr.mxu0 0.0
    %669 = vmatpush1.msra.mxu0 0.0
    %670 = vmatprep.subr.mxu0 0.0
    %671 = vmatpush1.msra.mxu0 0.0
    %672 = vmatprep.subr.mxu0 0.0
    %673 = vmatpush1.msra.mxu0 0.0
    %674 = vmatprep.subr.mxu0 0.0
    %675 = vmatpush1.msra.mxu0 0.0
    %676 = vmatprep.subr.mxu0 0.0
    %677 = vmatpush1.msra.mxu0 0.0
    %678 = vmatprep.subr.mxu0 0.0
    %679 = vmatpush1.msra.mxu0 0.0
    %680 = vmatprep.subr.mxu0 0.0
    %681 = vmatpush1.msra.mxu0 0.0
    %682 = vmatprep.subr.mxu0 0.0
    %683 = vmatpush1.msra.mxu0 0.0
    %684 = vmatprep.mubr.f32.mxu0 0.0
    %685 = vmatmul.mubr.f32.gmra.mrb[0].mxu0 %v609
    %v686 = vpop.f32.mrb[0].mxu0
    %v687 = vadd.f32 0.0, %v686
    %v688 = vpop.f32.mrb[0].mxu0
    %689 = vmatprep.mubr.f32.mxu0 0.0
    %690 = vmatmul.mubr.f32.gmra.mrb[0].mxu0 %v612
    %v691 = vpop.f32.mrb[0].mxu0
    %v692 = vadd.f32 0.0, %v691
    %v693 = vpop.f32.mrb[0].mxu0
    %694 = vmatprep.mubr.f32.mxu0 0.0
    %695 = vmatmul.mubr.f32.gmra.mrb[0].mxu0 %v615
    %v696 = vpop.f32.mrb[0].mxu0
    %v697 = vadd.f32 0.0, %v696
    %v698 = vpop.f32.mrb[0].mxu0
    %699 = vmatprep.mubr.f32.mxu0 0.0
    %700 = vmatmul.mubr.f32.gmra.mrb[0].mxu0 %v618
    %v701 = vpop.f32.mrb[0].mxu0
    %v702 = vadd.f32 0.0, %v701
    %v703 = vpop.f32.mrb[0].mxu0
    %704 = vdwg.mxu0
    %v705 = vmul.f32 %v600, %v687
    %v706 = vmul.f32 %v601, %v692
    %v707 = vmul.f32 %v602, %v697
    %v708 = vmul.f32 %v603, %v702
    %v709 = vld [vmem:[%s10] sm:$0xff]
    %v710 = vld [vmem:[%s10 + $0x8] sm:$0xff]
    %v711 = vld [vmem:[%s10 + $0x10] sm:$0xff]
    %v712 = vld [vmem:[%s10 + $0x18] sm:$0xff]
    %714 = vset.pattern.permute.xlu0 0
    %715 = vperm.xlu0 %714, %v709
    %v716 = vpop.permute.xlu0 %715
    %719 = vset.pattern.permute.xlu0 0
    %720 = vperm.xlu0 %719, %v710
    %v721 = vpop.permute.xlu0 %720
    %724 = vset.pattern.permute.xlu0 0
    %725 = vperm.xlu0 %724, %v711
    %v726 = vpop.permute.xlu0 %725
    %729 = vset.pattern.permute.xlu0 0
    %730 = vperm.xlu0 %729, %v712
    %v731 = vpop.permute.xlu0 %730
    %v733 = vmul.f32 %v716, %v705
    %v734 = vmul.f32 %v721, %v706
    %v735 = vmul.f32 %v726, %v707
    %v736 = vmul.f32 %v731, %v708
    %vm737 = vcmask 64512
    %v738 = vsel %vm737, %v733, 0.0
    %v739 = vsel %vm737, %v734, 0.0
    %v740 = vadd.f32 %v738, %v739
    %v741 = vsel %vm737, %v735, 0.0
    %v742 = vadd.f32 %v740, %v741
    %v743 = vsel %vm737, %v736, 0.0
    %v744 = vadd.f32 %v742, %v743
    %v745 = vrot.slane %v744, 4
    %v746 = vadd.f32 %v744, %v745
    %v747 = vrot.slane %v746, 2
    %v748 = vadd.f32 %v746, %v747
    %v749 = vrot.slane %v748, 1
    %v750 = vadd.f32 %v748, %v749
    %751 = vset.pattern.permute.xlu0 1
    %752 = vperm.xlu0 %751, %v709
    %v753 = vpop.permute.xlu0 %752
    %755 = vset.pattern.permute.xlu0 1
    %756 = vperm.xlu0 %755, %v710
    %v757 = vpop.permute.xlu0 %756
    %759 = vset.pattern.permute.xlu0 1
    %760 = vperm.xlu0 %759, %v711
    %v761 = vpop.permute.xlu0 %760
    %763 = vset.pattern.permute.xlu0 1
    %764 = vperm.xlu0 %763, %v712
    %v765 = vpop.permute.xlu0 %764
    %v767 = vmul.f32 %v753, %v705
    %v768 = vmul.f32 %v757, %v706
    %v769 = vmul.f32 %v761, %v707
    %v770 = vmul.f32 %v765, %v708
    %v771 = vsel %vm737, %v767, 0.0
    %v772 = vsel %vm737, %v768, 0.0
    %v773 = vadd.f32 %v771, %v772
    %v774 = vsel %vm737, %v769, 0.0
    %v775 = vadd.f32 %v773, %v774
    %v776 = vsel %vm737, %v770, 0.0
    %v777 = vadd.f32 %v775, %v776
    %v778 = vrot.slane %v777, 4
    %v779 = vadd.f32 %v777, %v778
    %v780 = vrot.slane %v779, 2
    %v781 = vadd.f32 %v779, %v780
    %v782 = vrot.slane %v781, 1
    %v783 = vadd.f32 %v781, %v782
    %784 = vset.pattern.permute.xlu0 2
    %785 = vperm.xlu0 %784, %v709
    %v786 = vpop.permute.xlu0 %785
    %788 = vset.pattern.permute.xlu0 2
    %789 = vperm.xlu0 %788, %v710
    %v790 = vpop.permute.xlu0 %789
    %792 = vset.pattern.permute.xlu0 2
    %793 = vperm.xlu0 %792, %v711
    %v794 = vpop.permute.xlu0 %793
    %796 = vset.pattern.permute.xlu0 2
    %797 = vperm.xlu0 %796, %v712
    %v798 = vpop.permute.xlu0 %797
    %v800 = vmul.f32 %v786, %v705
    %v801 = vmul.f32 %v790, %v706
    %v802 = vmul.f32 %v794, %v707
    %v803 = vmul.f32 %v798, %v708
    %v804 = vsel %vm737, %v800, 0.0
    %v805 = vsel %vm737, %v801, 0.0
    %v806 = vadd.f32 %v804, %v805
    %v807 = vsel %vm737, %v802, 0.0
    %v808 = vadd.f32 %v806, %v807
    %v809 = vsel %vm737, %v803, 0.0
    %v810 = vadd.f32 %v808, %v809
    %v811 = vrot.slane %v810, 4
    %v812 = vadd.f32 %v810, %v811
    %v813 = vrot.slane %v812, 2
    %v814 = vadd.f32 %v812, %v813
    %v815 = vrot.slane %v814, 1
    %v816 = vadd.f32 %v814, %v815
    %817 = vset.pattern.permute.xlu0 3
    %818 = vperm.xlu0 %817, %v709
    %v819 = vpop.permute.xlu0 %818
    %821 = vset.pattern.permute.xlu0 3
    %822 = vperm.xlu0 %821, %v710
    %v823 = vpop.permute.xlu0 %822
    %825 = vset.pattern.permute.xlu0 3
    %826 = vperm.xlu0 %825, %v711
    %v827 = vpop.permute.xlu0 %826
    %829 = vset.pattern.permute.xlu0 3
    %830 = vperm.xlu0 %829, %v712
    %v831 = vpop.permute.xlu0 %830
    %v833 = vmul.f32 %v819, %v705
    %v834 = vmul.f32 %v823, %v706
    %v835 = vmul.f32 %v827, %v707
    %v836 = vmul.f32 %v831, %v708
    %v837 = vsel %vm737, %v833, 0.0
    %v838 = vsel %vm737, %v834, 0.0
    %v839 = vadd.f32 %v837, %v838
    %v840 = vsel %vm737, %v835, 0.0
    %v841 = vadd.f32 %v839, %v840
    %v842 = vsel %vm737, %v836, 0.0
    %v843 = vadd.f32 %v841, %v842
    %v844 = vrot.slane %v843, 4
    %v845 = vadd.f32 %v843, %v844
    %v846 = vrot.slane %v845, 2
    %v847 = vadd.f32 %v845, %v846
    %v848 = vrot.slane %v847, 1
    %v849 = vadd.f32 %v847, %v848
    %vm850 = vcmask 1040384
    %v851 = vsel %vm850, %v750, %v783
    %vm852 = vcmask 1041408
    %v853 = vsel %vm852, %v851, %v816
    %vm854 = vcmask 1042432
    %v855 = vsel %vm854, %v853, %v849
    %vm856 = vcmask 60416
    %857 = vst.msk [vmem:[#allocation2] sm:$0xf] %vm856, %v855
    // Predicated region
    $region46: #{tpu_custom_call.1} parent=1 // pred_check
      _
    $region47: #{tpu_custom_call.1} parent=1 // pred_check_branch
      %859 = sbr.rel (0) target = $region49
    $region48: #{tpu_custom_call.1} parent=1 // pred_region
      %s861 = ssub.s32 64, 64
      %862 = vsyncadd [#allocation3], %s861
      %s864 = sshll.u32 [#allocation2], 4
      %s865 = int_to_ptr.vmem [resolvable:$true] %s864
      %867 = dma.vmem_to_hbm [thread:$0]  %s865, 64, %s11, [#allocation3]
    $region49: #{tpu_custom_call.1} parent=1 // pred_fallthru
      _
    // Predicated region
    $region50: #{tpu_custom_call.1} parent=1 // pred_check
      _
    $region51: #{tpu_custom_call.1} parent=1 // pred_check_branch
      %869 = sbr.rel (0) target = $region53
    $region52: #{tpu_custom_call.1} parent=1 // pred_region
      %870 = dma.done [#allocation3], 64
    $region53: #{tpu_custom_call.1} parent=1 // pred_fallthru
      _
    %871 = vsyncpa [#allocation3], 1

</llo_original>
